<compile_context>
chip_gen: v6e
topology: v6e:2x2x1
jax: 0.10.0
libtpu: 0.0.40
codegen_flags: <defaults>
</compile_context>

<pallas_src>
import functools
from typing import NamedTuple

import jax
import jax.numpy as jnp
from jax.experimental import pallas as pl
from jax.experimental.pallas import tpu as pltpu


def _round_up(x, m):
    return (x + m - 1) // m * m


def _sigmoid_f32(x):
    # Exact identity; tanh is a single EUP op vs exp+reciprocal for sigmoid.
    return 0.5 * (jnp.tanh(0.5 * x) + 1.0)


def _lstm_cell_kernel(xc_ref, c_ref, w_ref, b_ref, h_out_ref, c_out_ref, *,
                      block_h):
    """One grid step: all 4 gates for a (block_b, block_h) tile of the state.

    xc_ref : (block_b, K_pad)      combined [x, h_prev, 0-pad] rows (f32)
    c_ref  : (block_b, block_h)    previous cell-state tile
    w_ref  : (K_pad, 4*block_h)    gate-contiguous weight tile (bf16 or f32)
    b_ref  : (1, 4*block_h)        gate biases (f32)
    """
    # Cast activations to the weights' dtype so bf16 weights use the bf16 MXU
    # path; accumulation is f32 via preferred_element_type.
    xc = xc_ref[...].astype(w_ref.dtype)

    # Single fused MXU matmul for all 4 gates of this hidden tile.
    pre = jnp.dot(xc, w_ref[...], preferred_element_type=jnp.float32)
    pre = pre + b_ref[...]

    # Lane-aligned static gate views; consume each gate immediately to keep
    # few f32 tiles live (no spill-inducing 8-tile epilogue).
    c_prev = c_ref[...].astype(jnp.float32)
    c_next = _sigmoid_f32(pre[:, 1 * block_h:2 * block_h]) * c_prev          # forget
    c_next = c_next + (_sigmoid_f32(pre[:, 0 * block_h:1 * block_h])          # input
                       * jnp.tanh(pre[:, 2 * block_h:3 * block_h]))           # cell
    h_next = _sigmoid_f32(pre[:, 3 * block_h:4 * block_h]) * jnp.tanh(c_next)  # output

    h_out_ref[...] = h_next.astype(h_out_ref.dtype)
    c_out_ref[...] = c_next.astype(c_out_ref.dtype)


class LSTMfParams(NamedTuple):
    w: jax.Array           # (K_pad, 4*hidden) hidden-tile-major, gate-contiguous
    b: jax.Array           # (1, 4*hidden) f32, same column order
    input_size: int
    hidden_size: int
    block_h: int
    k_pad: int


def _choose_block_h(hidden_size, k_pad, w_bytes):
    """Largest 128-multiple divisor of hidden_size that (a) keeps the
    double-buffered weight tile under ~24 MiB (safe on v7x's 64 MiB VMEM),
    (b) is <= 256 (bounds f32 epilogue vreg pressure; fused N is still >=
    4*128=512 lanes), and (c) leaves >= 2 hidden tiles when possible so both
    v7x TensorCores get work."""
    assert hidden_size % 128 == 0, "hidden_size must be a multiple of 128"
    budget = 24 << 20
    candidates = [bh for bh in range(128, hidden_size + 1, 128)
                  if hidden_size % bh == 0]
    valid = [bh for bh in candidates
             if bh <= 256 and 2 * k_pad * 4 * bh * w_bytes <= budget]
    bh = max(valid) if valid else 128
    if bh == hidden_size and hidden_size > 128:
        smaller = [c for c in candidates if c < hidden_size and c <= 256]
        if smaller:
            bh = max(smaller)
    return bh


def prepare_lstm_weights(weight, bias, input_size, hidden_size, *,
                         compute_dtype=jnp.bfloat16, block_h=None):
    """One-time weight re-layout, hoisted out of the per-step path.

    weight: (4*hidden, input+hidden)  nn.Linear layout, gate order [i, f, g, o]
    bias:   (4*hidden,)
    Returns LSTMfParams with weights laid out (K_pad, 4*hidden) where columns
    are ordered hidden-tile-major with the 4 gates contiguous per tile, so the
    kernel can do one fused matmul per (batch, hidden) tile.
    """
    four_h, k = weight.shape
    assert four_h == 4 * hidden_size
    assert k == input_size + hidden_size
    assert hidden_size % 128 == 0, "hidden_size must be a multiple of 128"

    k_pad = _round_up(k, 128)
    w_bytes = jnp.dtype(compute_dtype).itemsize
    if block_h is None:
        block_h = _choose_block_h(hidden_size, k_pad, w_bytes)
    assert block_h % 128 == 0 and hidden_size % block_h == 0
    n_ht = hidden_size // block_h

    # Zero-pad the contraction dim (padded `combined` columns are also zero).
    w = jnp.pad(weight, ((0, 0), (0, k_pad - k)))                # (4H, K_pad)
    # (4H, K_pad) -> (gate, tile, within, K) -> (K, tile, gate, within)
    w = w.reshape(4, n_ht, block_h, k_pad).transpose(3, 1, 0, 2)
    w = w.reshape(k_pad, 4 * hidden_size).astype(compute_dtype)

    b = bias.reshape(4, n_ht, block_h).transpose(1, 0, 2)
    b = b.reshape(1, 4 * hidden_size).astype(jnp.float32)

    return LSTMfParams(w, b, input_size, hidden_size, block_h, k_pad)


def lstm_f_cell(x, h_prev, c_prev, params: LSTMfParams, *, block_b=None,
                donate_cell_state=False):
    """One LSTMfCell step matching the PyTorch forward semantics.

    x: (B, input_size), h_prev/c_prev: (B, hidden).  `params` comes from
    prepare_lstm_weights (reused across timesteps).  Returns (h_next, c_next).
    Set donate_cell_state=True only if the caller never reads c_prev again.
    """
    w_r, b_r, input_size, H, block_h, k_pad = params
    B = x.shape[0]
    K = input_size + H
    assert x.shape == (B, input_size)
    assert h_prev.shape == (B, H) and c_prev.shape == (B, H)
    assert w_r.shape == (k_pad, 4 * H) and b_r.shape == (1, 4 * H)

    if block_b is None:
        block_b = B if B <= 128 else 128

    # Cheap per-step concat + K zero-pad; the big weight operand is untouched
    # per step.  Activations stay f32 in HBM; cast to weight dtype in-kernel.
    combined = jnp.concatenate([x, h_prev], axis=1).astype(jnp.float32)
    if k_pad > K:
        combined = jnp.pad(combined, ((0, 0), (0, k_pad - K)))

    n_h_tiles = H // block_h
    n_b_tiles = pl.cdiv(B, block_b)
    grid = (n_h_tiles, n_b_tiles)   # hidden OUTER -> weight tiles DMAed once

    # Explicit scoped-VMEM limit (v5e defaults to 16 MiB of its 128 MiB).
    w_bytes = jnp.dtype(w_r.dtype).itemsize
    tile_bytes = (
        2 * k_pad * 4 * block_h * w_bytes       # double-buffered weight tile
        + 2 * block_b * k_pad * 4               # combined (f32)
        + 2 * block_b * block_h * 4             # c_prev tile
        + 2 * 4 * block_h * 4                   # bias tile
        + 2 * 2 * block_b * block_h * 4         # h_out, c_out tiles
    )
    vmem_limit = int(1.5 * tile_bytes) + (8 << 20)
    vmem_limit = max(32 << 20, min(vmem_limit, 64 << 20))

    kernel = functools.partial(_lstm_cell_kernel, block_h=block_h)

    h_next, c_next = pl.pallas_call(
        kernel,
        out_shape=(
            jax.ShapeDtypeStruct((B, H), h_prev.dtype),
            jax.ShapeDtypeStruct((B, H), c_prev.dtype),
        ),
        grid=grid,
        in_specs=[
            pl.BlockSpec((block_b, k_pad), lambda j, i: (i, 0)),         # combined
            pl.BlockSpec((block_b, block_h), lambda j, i: (i, j)),       # c_prev
            pl.BlockSpec((k_pad, 4 * block_h), lambda j, i: (0, j)),     # weights
            pl.BlockSpec((1, 4 * block_h), lambda j, i: (0, j)),         # bias
        ],
        out_specs=(
            pl.BlockSpec((block_b, block_h), lambda j, i: (i, j)),       # h_next
            pl.BlockSpec((block_b, block_h), lambda j, i: (i, j)),       # c_next
        ),
        input_output_aliases=({1: 1} if donate_cell_state else {}),
        compiler_params=pltpu.CompilerParams(
            dimension_semantics=("parallel", "parallel"),
            vmem_limit_bytes=vmem_limit,
        ),
    )(combined, c_prev, w_r, b_r)
    return h_next, c_next


def _ref_lstm_f_cell(x, h_prev, c_prev, weight, bias):
    """Pure-JAX reference mirroring the PyTorch forward, for verification."""
    combined = jnp.concatenate([x, h_prev], axis=1)
    gates = combined @ weight.T + bias
    H = h_prev.shape[1]
    i, f, g, o = (gates[:, k * H:(k + 1) * H] for k in range(4))
    c_next = jax.nn.sigmoid(f) * c_prev + jax.nn.sigmoid(i) * jnp.tanh(g)
    h_next = jax.nn.sigmoid(o) * jnp.tanh(c_next)
    return h_next, c_next


if __name__ == "__main__":
    # Small shapes: hidden is a multiple of 128 (lane-dense state tiles),
    # batch a multiple of 8 (full sublanes).  K = 288 exercises the K-padding.
    B = 16
    input_size = 32
    hidden_size = 256

    key = jax.random.PRNGKey(0)
    kx, kh, kc, kw, kb = jax.random.split(key, 5)

    x = jax.random.normal(kx, (B, input_size), dtype=jnp.float32)
    h_prev = jax.random.normal(kh, (B, hidden_size), dtype=jnp.float32)
    c_prev = jax.random.normal(kc, (B, hidden_size), dtype=jnp.float32)

    # Deterministic nn.Linear-style init: U(-k, k), k = 1/sqrt(fan_in).
    fan_in = input_size + hidden_size
    bound = 1.0 / float(fan_in ** 0.5)
    weight = jax.random.uniform(kw, (4 * hidden_size, fan_in),
                                minval=-bound, maxval=bound, dtype=jnp.float32)
    bias = jax.random.uniform(kb, (4 * hidden_size,),
                              minval=-bound, maxval=bound, dtype=jnp.float32)

    # Reference computed up front (kernel never donates c_prev in this test).
    h_ref, c_ref = _ref_lstm_f_cell(x, h_prev, c_prev, weight, bias)

    # f32 weight path: tight tolerance.
    params_f32 = prepare_lstm_weights(weight, bias, input_size, hidden_size,
                                      compute_dtype=jnp.float32)
    h32, c32 = lstm_f_cell(x, h_prev, c_prev, params_f32)
    jax.block_until_ready((h32, c32))
    assert jnp.allclose(h32, h_ref, atol=1e-5, rtol=1e-5)
    assert jnp.allclose(c32, c_ref, atol=1e-5, rtol=1e-5)

    # bf16 weight path (default — the memory-bound win): relaxed tolerance.
    params_bf16 = prepare_lstm_weights(weight, bias, input_size, hidden_size)
    h16, c16 = lstm_f_cell(x, h_prev, c_prev, params_bf16)
    jax.block_until_ready((h16, c16))
    assert jnp.allclose(h16, h_ref, atol=3e-2, rtol=3e-2)
    assert jnp.allclose(c16, c_ref, atol=3e-2, rtol=3e-2)

    print("KERNEL_OK")
</pallas_src>

<mosaic_0001>
module attributes {stable_mosaic.version = 11 : i64} {
  func.func @_lstm_cell_kernel(%arg0: i32, %arg1: i32, %arg2: memref<16x384xf32, #tpu.memory_space<vmem>>, %arg3: memref<16x128xf32, #tpu.memory_space<vmem>>, %arg4: memref<384x512xf32, #tpu.memory_space<vmem>>, %arg5: memref<1x512xf32, #tpu.memory_space<vmem>>, %arg6: memref<16x128xf32, #tpu.memory_space<vmem>>, %arg7: memref<16x128xf32, #tpu.memory_space<vmem>>) attributes {dimension_semantics = [#tpu.dimension_semantics<parallel>, #tpu.dimension_semantics<parallel>], iteration_bounds = array<i64: 2, 1>, scalar_prefetch = 0 : i64, scratch_operands = 0 : i64, tpu.core_type = #tpu.core_type<tc>, window_params = [{transform_indices = @transform_0, window_bounds = array<i64: 16, 384>}, {transform_indices = @transform_1, window_bounds = array<i64: 16, 128>}, {transform_indices = @transform_2, window_bounds = array<i64: 384, 512>}, {transform_indices = @transform_3, window_bounds = array<i64: 1, 512>}, {transform_indices = @transform_4, window_bounds = array<i64: 16, 128>}, {transform_indices = @transform_5, window_bounds = array<i64: 16, 128>}]} {
    %c0 = arith.constant 0 : index
    %c0_0 = arith.constant 0 : index
    %0 = vector.load %arg2[%c0, %c0_0] : memref<16x384xf32, #tpu.memory_space<vmem>>, vector<16x384xf32>
    %c0_1 = arith.constant 0 : index
    %c0_2 = arith.constant 0 : index
    %1 = vector.load %arg4[%c0_1, %c0_2] : memref<384x512xf32, #tpu.memory_space<vmem>>, vector<384x512xf32>
    %cst = arith.constant dense<0.000000e+00> : vector<16x512xf32>
    %2 = tpu.matmul %0, %1, %cst {dimension_numbers = #tpu.dot_dimension_numbers<[1], [0], [0], [1], [0, 0, 1, 1], [], []>} : vector<16x384xf32>, vector<384x512xf32>, vector<16x512xf32> -> vector<16x512xf32>
    %c0_3 = arith.constant 0 : index
    %c0_4 = arith.constant 0 : index
    %3 = vector.load %arg5[%c0_3, %c0_4] : memref<1x512xf32, #tpu.memory_space<vmem>>, vector<1x512xf32>
    %4 = vector.broadcast %3 : vector<1x512xf32> to vector<16x512xf32>
    %5 = arith.addf %2, %4 : vector<16x512xf32>
    %c0_5 = arith.constant 0 : index
    %c0_6 = arith.constant 0 : index
    %6 = vector.load %arg3[%c0_5, %c0_6] : memref<16x128xf32, #tpu.memory_space<vmem>>, vector<16x128xf32>
    %7 = vector.extract_strided_slice %5 {offsets = [0, 128], sizes = [16, 128], strides = [1, 1]} : vector<16x512xf32> to vector<16x128xf32>
    %cst_7 = arith.constant 5.000000e-01 : f32
    %8 = vector.broadcast %cst_7 : f32 to vector<16x128xf32>
    %9 = arith.mulf %8, %7 : vector<16x128xf32>
    %10 = math.tanh %9 : vector<16x128xf32>
    %cst_8 = arith.constant 1.000000e+00 : f32
    %11 = vector.broadcast %cst_8 : f32 to vector<16x128xf32>
    %12 = arith.addf %10, %11 : vector<16x128xf32>
    %cst_9 = arith.constant 5.000000e-01 : f32
    %13 = vector.broadcast %cst_9 : f32 to vector<16x128xf32>
    %14 = arith.mulf %13, %12 : vector<16x128xf32>
    %15 = arith.mulf %14, %6 : vector<16x128xf32>
    %16 = vector.extract_strided_slice %5 {offsets = [0, 0], sizes = [16, 128], strides = [1, 1]} : vector<16x512xf32> to vector<16x128xf32>
    %cst_10 = arith.constant 5.000000e-01 : f32
    %17 = vector.broadcast %cst_10 : f32 to vector<16x128xf32>
    %18 = arith.mulf %17, %16 : vector<16x128xf32>
    %19 = math.tanh %18 : vector<16x128xf32>
    %cst_11 = arith.constant 1.000000e+00 : f32
    %20 = vector.broadcast %cst_11 : f32 to vector<16x128xf32>
    %21 = arith.addf %19, %20 : vector<16x128xf32>
    %cst_12 = arith.constant 5.000000e-01 : f32
    %22 = vector.broadcast %cst_12 : f32 to vector<16x128xf32>
    %23 = arith.mulf %22, %21 : vector<16x128xf32>
    %24 = vector.extract_strided_slice %5 {offsets = [0, 256], sizes = [16, 128], strides = [1, 1]} : vector<16x512xf32> to vector<16x128xf32>
    %25 = math.tanh %24 : vector<16x128xf32>
    %26 = arith.mulf %23, %25 : vector<16x128xf32>
    %27 = arith.addf %15, %26 : vector<16x128xf32>
    %28 = vector.extract_strided_slice %5 {offsets = [0, 384], sizes = [16, 128], strides = [1, 1]} : vector<16x512xf32> to vector<16x128xf32>
    %cst_13 = arith.constant 5.000000e-01 : f32
    %29 = vector.broadcast %cst_13 : f32 to vector<16x128xf32>
    %30 = arith.mulf %29, %28 : vector<16x128xf32>
    %31 = math.tanh %30 : vector<16x128xf32>
    %cst_14 = arith.constant 1.000000e+00 : f32
    %32 = vector.broadcast %cst_14 : f32 to vector<16x128xf32>
    %33 = arith.addf %31, %32 : vector<16x128xf32>
    %cst_15 = arith.constant 5.000000e-01 : f32
    %34 = vector.broadcast %cst_15 : f32 to vector<16x128xf32>
    %35 = arith.mulf %34, %33 : vector<16x128xf32>
    %36 = math.tanh %27 : vector<16x128xf32>
    %37 = arith.mulf %35, %36 : vector<16x128xf32>
    %c0_16 = arith.constant 0 : index
    %c0_17 = arith.constant 0 : index
    %38 = vector.load %arg6[%c0_16, %c0_17] : memref<16x128xf32, #tpu.memory_space<vmem>>, vector<16x128xf32>
    tpu.vector_store %arg6[%c0_16, %c0_17], %37 {strides = array<i32>} : memref<16x128xf32, #tpu.memory_space<vmem>>, vector<16x128xf32>,
    %c0_18 = arith.constant 0 : index
    %c0_19 = arith.constant 0 : index
    %39 = vector.load %arg7[%c0_18, %c0_19] : memref<16x128xf32, #tpu.memory_space<vmem>>, vector<16x128xf32>
    tpu.vector_store %arg7[%c0_18, %c0_19], %27 {strides = array<i32>} : memref<16x128xf32, #tpu.memory_space<vmem>>, vector<16x128xf32>,
    return
  }
  func.func @transform_0(%arg0: i32, %arg1: i32) -> (i32, i32) {
    %c0_i32 = arith.constant 0 : i32
    %c0_i32_0 = arith.constant 0 : i32
    return %arg1, %c0_i32 : i32, i32
  }
  func.func @transform_1(%arg0: i32, %arg1: i32) -> (i32, i32) {
    %c0_i32 = arith.constant 0 : i32
    return %arg1, %arg0 : i32, i32
  }
  func.func @transform_2(%arg0: i32, %arg1: i32) -> (i32, i32) {
    %c0_i32 = arith.constant 0 : i32
    %c0_i32_0 = arith.constant 0 : i32
    return %c0_i32, %arg0 : i32, i32
  }
  func.func @transform_3(%arg0: i32, %arg1: i32) -> (i32, i32) {
    %c0_i32 = arith.constant 0 : i32
    %c0_i32_0 = arith.constant 0 : i32
    return %c0_i32, %arg0 : i32, i32
  }
  func.func @transform_4(%arg0: i32, %arg1: i32) -> (i32, i32) {
    %c0_i32 = arith.constant 0 : i32
    return %arg1, %arg0 : i32, i32
  }
  func.func @transform_5(%arg0: i32, %arg1: i32) -> (i32, i32) {
    %c0_i32 = arith.constant 0 : i32
    return %arg1, %arg0 : i32, i32
  }
}

</mosaic_0001>

<llo_original>
// kernel: tpu_custom_call.1
$region0: #{tpu_custom_call.1}
  #allocation0 [shape = 'u32[]', space=smem, size = 0x4, offset = 0x4, fixed_abs, tag = 'smem constant byte address 0x4 - core index']
  #allocation1 [shape = 'u32[144,128]{1,0:T(1,128)}', space=vmem, size = 0x12000, scoped, tag = 'internal scratch']
  %s0 = inlined_call_operand.hbm [shape: f32[16,384], index: 0, kind: input, shape index: {}]
  %s1 = inlined_call_operand.hbm [shape: f32[16,256], index: 1, kind: input, shape index: {}]
  %s2 = inlined_call_operand.hbm [shape: f32[384,1024], index: 2, kind: input, shape index: {}]
  %s3 = inlined_call_operand.hbm [shape: f32[1,1024], index: 3, kind: input, shape index: {}]
  %s4 = inlined_call_operand.hbm [shape: f32[16,256], index: 4, kind: output, shape index: {0}]
  %s5 = inlined_call_operand.hbm [shape: f32[16,256], index: 5, kind: output, shape index: {1}]
  %6 = xla_tuple %s4, %s5
  %s7 = sld [smem:[#allocation0]]
  $region73: #{tpu_custom_call.1} parent=0
    _
  %s9 = ssub.s32 1, %s7
  %s10 = scalar_select 0, %s9, %s7
  $region1: #{tpu_custom_call.1} parent=0
    #allocation2 [shape = 'u8[24576]{0}', space=vmem, size = 0x6000, scoped, tag = 'input window, operand 0, single buffered']
    #allocation3 [shape = 's32[2]{0}', space=sflag, size = 0x8, scoped, tag = 'scoped memory for tpu_custom_call.1']
    #allocation4 [shape = 's32[2]{0}', space=sflag, size = 0x8, scoped, tag = 'scoped memory for tpu_custom_call.1']
    #allocation5 [shape = 'u8[16384]{0}', space=vmem, size = 0x4000, scoped, tag = 'input window, operand 1']
    #allocation6 [shape = 's32[2]{0}', space=sflag, size = 0x8, scoped, tag = 'scoped memory for tpu_custom_call.1']
    #allocation7 [shape = 'u8[1572864]{0}', space=vmem, size = 0x180000, scoped, tag = 'input window, operand 2']
    #allocation8 [shape = 'u8[4096]{0}', space=vmem, size = 0x1000, scoped, tag = 'input window, operand 3']
    #allocation9 [shape = 's32[2]{0}', space=sflag, size = 0x8, scoped, tag = 'scoped memory for tpu_custom_call.1']
    #allocation10 [shape = 'u8[16384]{0}', space=vmem, size = 0x4000, scoped, tag = 'output window, operand 0']
    #allocation11 [shape = 'u8[16384]{0}', space=vmem, size = 0x4000, scoped, tag = 'output window, operand 1']
    #allocation12 [shape = 's32[2]{0}', space=sflag, size = 0x8, scoped, tag = 'scoped memory for tpu_custom_call.1']
    %11 = vsyncpa [#allocation3], 0
    %12 = vsyncpa [#allocation6], 0
    %s13 = scalar_lea.sflag [#allocation6], 1
    %14 = vsyncpa %s13, 0
    %15 = vsyncpa [#allocation9], 0
    %s16 = scalar_lea.sflag [#allocation9], 1
    %17 = vsyncpa %s16, 0
    %18 = vsyncpa [#allocation4], 0
    %s19 = scalar_lea.sflag [#allocation4], 1
    %20 = vsyncpa %s19, 0
    %21 = vsyncpa [#allocation12], 0
    %s22 = scalar_lea.sflag [#allocation12], 1
    %23 = vsyncpa %s22, 0
    loop: start=0, step=1, limit=4
    $region2: #{tpu_custom_call.1} parent=1 // loop_pre_header
      _
    $region3: #{tpu_custom_call.1} parent=1 // loop_header
      %s25 = sphi 0, %s29
      %p26 = scmp.ge.s32.totalorder %s25, 4
      %s32 = sphi 0, %s44
      %s33 = sphi 0, %s40
      %s34 = sphi 0, %s32
      %s35 = sphi 0, %s33
      %s36 = sphi 0, %s34
      %s37 = sphi 0, %s35
      %s47 = sphi 0, %s49
      %s50 = sphi 0, %s47
      %s51 = sphi 0, %s50
      %s67 = sphi 0, %s51
      %s75 = sphi 0, %s77
      %s78 = sphi 0, %s75
      %s79 = sphi 0, %s78
      %s95 = sphi 0, %s79
      %s101 = sphi 0, %s103
      %s104 = sphi 0, %s101
      %s105 = sphi 0, %s104
      %s121 = sphi 0, %s105
      %s127 = sphi 0, %s129
      %s130 = sphi 0, %s127
      %s131 = sphi 0, %s130
      %s147 = sphi 0, %s131
      %s155 = sphi 0, %s157
      %s158 = sphi 0, %s155
      %s159 = sphi 0, %s158
      %s175 = sphi 0, %s159
      %s183 = sphi 0, %s185
      %s186 = sphi 0, %s183
      %s187 = sphi 0, %s186
      %s203 = sphi 0, %s187
    $region4: #{tpu_custom_call.1} parent=1 // loop_header_branch
      %28 = sbr.rel (%p26) target = $region8
    $region5: #{tpu_custom_call.1} parent=1 // loop_body
      %s30 = ssub.s32 %s25, 1
      %s31 = ssub.s32 %s25, 2
      %s38 = sadd.s32 1, %s33
      %p39 = scmp.ge.s32.totalorder %s38, 1
      %s40 = scalar_select %p39, 0, %s38
      %s41 = sadd.s32 1, %s32
      %s42 = scalar_select %p39, %s41, %s32
      %p43 = scmp.ge.s32.totalorder %s42, 2
      %s44 = scalar_select %p43, 0, %s42
      %s45 = ssub.s32 %s33, %s40
      %p46 = scmp.eq.s32.totalorder %s45, 0
      %s48 = sadd.s32 %s47, 1
      %s49 = scalar_select %p46, %s47, %s48
      %p52 = pneg %p46
      %p53 = scmp.eq.s32.totalorder %s25, 1
      %p54 = por %p52, %p53
      %p55 = scmp.ne.s32.totalorder %s47, %s50
      %p56 = scmp.eq.s32.totalorder %s25, 0
      %p57 = por %p55, %p56
      %p58 = scmp.ne.s32.totalorder %s47, %s50
      %p59 = scmp.eq.s32.totalorder %s30, 1
      %p60 = por %p58, %p59
      %p61 = scmp.ne.s32.totalorder %s50, %s51
      %p62 = scmp.eq.s32.totalorder %s30, 0
      %p63 = por %p61, %p62
      %p64 = scmp.ne.s32.totalorder %s50, %s51
      %p65 = scmp.eq.s32.totalorder %s31, 1
      %p66 = por %p64, %p65
      %p68 = scmp.ne.s32.totalorder %s51, %s67
      %p69 = scmp.eq.s32.totalorder %s31, 0
      %p70 = por %p68, %p69
      %s71 = ssub.s32 %s33, %s40
      %s72 = ssub.s32 %s32, %s44
      %s73 = sor.u32 %s71, %s72
      %p74 = scmp.eq.s32.totalorder %s73, 0
      %s76 = sadd.s32 %s75, 1
      %s77 = scalar_select %p74, %s75, %s76
      %p80 = pneg %p74
      %p81 = scmp.eq.s32.totalorder %s25, 1
      %p82 = por %p80, %p81
      %p83 = scmp.ne.s32.totalorder %s75, %s78
      %p84 = scmp.eq.s32.totalorder %s25, 0
      %p85 = por %p83, %p84
      %p86 = scmp.ne.s32.totalorder %s75, %s78
      %p87 = scmp.eq.s32.totalorder %s30, 1
      %p88 = por %p86, %p87
      %p89 = scmp.ne.s32.totalorder %s78, %s79
      %p90 = scmp.eq.s32.totalorder %s30, 0
      %p91 = por %p89, %p90
      %p92 = scmp.ne.s32.totalorder %s78, %s79
      %p93 = scmp.eq.s32.totalorder %s31, 1
      %p94 = por %p92, %p93
      %p96 = scmp.ne.s32.totalorder %s79, %s95
      %p97 = scmp.eq.s32.totalorder %s31, 0
      %p98 = por %p96, %p97
      %s99 = ssub.s32 %s32, %s44
      %p100 = scmp.eq.s32.totalorder %s99, 0
      %s102 = sadd.s32 %s101, 1
      %s103 = scalar_select %p100, %s101, %s102
      %p106 = pneg %p100
      %p107 = scmp.eq.s32.totalorder %s25, 1
      %p108 = por %p106, %p107
      %p109 = scmp.ne.s32.totalorder %s101, %s104
      %p110 = scmp.eq.s32.totalorder %s25, 0
      %p111 = por %p109, %p110
      %p112 = scmp.ne.s32.totalorder %s101, %s104
      %p113 = scmp.eq.s32.totalorder %s30, 1
      %p114 = por %p112, %p113
      %p115 = scmp.ne.s32.totalorder %s104, %s105
      %p116 = scmp.eq.s32.totalorder %s30, 0
      %p117 = por %p115, %p116
      %p118 = scmp.ne.s32.totalorder %s104, %s105
      %p119 = scmp.eq.s32.totalorder %s31, 1
      %p120 = por %p118, %p119
      %p122 = scmp.ne.s32.totalorder %s105, %s121
      %p123 = scmp.eq.s32.totalorder %s31, 0
      %p124 = por %p122, %p123
      %s125 = ssub.s32 %s32, %s44
      %p126 = scmp.eq.s32.totalorder %s125, 0
      %s128 = sadd.s32 %s127, 1
      %s129 = scalar_select %p126, %s127, %s128
      %p132 = pneg %p126
      %p133 = scmp.eq.s32.totalorder %s25, 1
      %p134 = por %p132, %p133
      %p135 = scmp.ne.s32.totalorder %s127, %s130
      %p136 = scmp.eq.s32.totalorder %s25, 0
      %p137 = por %p135, %p136
      %p138 = scmp.ne.s32.totalorder %s127, %s130
      %p139 = scmp.eq.s32.totalorder %s30, 1
      %p140 = por %p138, %p139
      %p141 = scmp.ne.s32.totalorder %s130, %s131
      %p142 = scmp.eq.s32.totalorder %s30, 0
      %p143 = por %p141, %p142
      %p144 = scmp.ne.s32.totalorder %s130, %s131
      %p145 = scmp.eq.s32.totalorder %s31, 1
      %p146 = por %p144, %p145
      %p148 = scmp.ne.s32.totalorder %s131, %s147
      %p149 = scmp.eq.s32.totalorder %s31, 0
      %p150 = por %p148, %p149
      %s151 = ssub.s32 %s33, %s40
      %s152 = ssub.s32 %s32, %s44
      %s153 = sor.u32 %s151, %s152
      %p154 = scmp.eq.s32.totalorder %s153, 0
      %s156 = sadd.s32 %s155, 1
      %s157 = scalar_select %p154, %s155, %s156
      %p160 = pneg %p154
      %p161 = scmp.eq.s32.totalorder %s25, 1
      %p162 = por %p160, %p161
      %p163 = scmp.ne.s32.totalorder %s155, %s158
      %p164 = scmp.eq.s32.totalorder %s25, 0
      %p165 = por %p163, %p164
      %p166 = scmp.ne.s32.totalorder %s155, %s158
      %p167 = scmp.eq.s32.totalorder %s30, 1
      %p168 = por %p166, %p167
      %p169 = scmp.ne.s32.totalorder %s158, %s159
      %p170 = scmp.eq.s32.totalorder %s30, 0
      %p171 = por %p169, %p170
      %p172 = scmp.ne.s32.totalorder %s158, %s159
      %p173 = scmp.eq.s32.totalorder %s31, 1
      %p174 = por %p172, %p173
      %p176 = scmp.ne.s32.totalorder %s159, %s175
      %p177 = scmp.eq.s32.totalorder %s31, 0
      %p178 = por %p176, %p177
      %s179 = ssub.s32 %s33, %s40
      %s180 = ssub.s32 %s32, %s44
      %s181 = sor.u32 %s179, %s180
      %p182 = scmp.eq.s32.totalorder %s181, 0
      %s184 = sadd.s32 %s183, 1
      %s185 = scalar_select %p182, %s183, %s184
      %p188 = pneg %p182
      %p189 = scmp.eq.s32.totalorder %s25, 1
      %p190 = por %p188, %p189
      %p191 = scmp.ne.s32.totalorder %s183, %s186
      %p192 = scmp.eq.s32.totalorder %s25, 0
      %p193 = por %p191, %p192
      %p194 = scmp.ne.s32.totalorder %s183, %s186
      %p195 = scmp.eq.s32.totalorder %s30, 1
      %p196 = por %p194, %p195
      %p197 = scmp.ne.s32.totalorder %s186, %s187
      %p198 = scmp.eq.s32.totalorder %s30, 0
      %p199 = por %p197, %p198
      %p200 = scmp.ne.s32.totalorder %s186, %s187
      %p201 = scmp.eq.s32.totalorder %s31, 1
      %p202 = por %p200, %p201
      %p204 = scmp.ne.s32.totalorder %s187, %s203
      %p205 = scmp.eq.s32.totalorder %s31, 0
      %p206 = por %p204, %p205
      %p207 = scmp.le.s32.totalorder 1, %s25
      %p208 = scmp.lt.s32.totalorder %s25, 3
      %p209 = pnand %p207, %p208
      %p210 = pneg %p209
      // Predicated region
      $region9: #{tpu_custom_call.1} parent=5 // pred_check
        _
      $region10: #{tpu_custom_call.1} parent=5 // pred_check_branch
        %212 = sbr.rel (%p209) target = $region12
      $region11: #{tpu_custom_call.1} parent=5 // pred_region
        %s213 = ssub.s32 %s25, 1
        // Predicated region
        $region13: #{tpu_custom_call.1} parent=11 // pred_check
          %p214 = pneg %p63
        $region14: #{tpu_custom_call.1} parent=11 // pred_check_branch
          %216 = sbr.rel (%p214) target = $region16
        $region15: #{tpu_custom_call.1} parent=11 // pred_region
          %s217 = smul.u32 2, %s35
          %s219 = ssub.s32 768, 768
          %220 = vsyncadd [#allocation3], %s219
          %s221 = smul.addr %s217, 3
          %s222 = smul.addr %s221, 128
          %s223 = scalar_lea.hbm %s0, %s222
          %s224 = sshll.u32 [#allocation2], 4
          %s225 = int_to_ptr.vmem [resolvable:$true] %s224
          %230 = dma.hbm_to_vmem [thread:$0]  %s223, 768, %s225, [#allocation3], 384, 384, 24
        $region16: #{tpu_custom_call.1} parent=11 // pred_fallthru
          _
      $region12: #{tpu_custom_call.1} parent=5 // pred_fallthru
        _
      %p231 = scmp.lt.s32.totalorder %s25, 2
      // Predicated region
      $region17: #{tpu_custom_call.1} parent=5 // pred_check
        %p232 = pneg %p231
      $region18: #{tpu_custom_call.1} parent=5 // pred_check_branch
        %234 = sbr.rel (%p232) target = $region20
      $region19: #{tpu_custom_call.1} parent=5 // pred_region
        // Predicated region
        $region21: #{tpu_custom_call.1} parent=19 // pred_check
          %p235 = pneg %p85
        $region22: #{tpu_custom_call.1} parent=19 // pred_check_branch
          %237 = sbr.rel (%p235) target = $region24
        $region23: #{tpu_custom_call.1} parent=19 // pred_region
          %s238 = sand.u32 %s25, 1
          %s239 = scalar_lea.sflag [#allocation6], %s238
          %s240 = sand.u32 %s75, 1
          %s241 = smul.addr %s240, 16
          %s242 = scalar_lea.vmem [#allocation5], %s241
          %s243 = smul.u32 2, %s33
          %s245 = ssub.s32 256, 256
          %246 = vsyncadd %s239, %s245
          %s247 = smul.addr %s243, 2
          %s248 = sadd.s32 %s32, %s247
          %s249 = smul.addr %s248, 128
          %s250 = scalar_lea.hbm %s1, %s249
          %s251 = sshll.u32 %s242, 4
          %s252 = int_to_ptr.vmem [resolvable:$true] %s251
          %257 = dma.hbm_to_vmem [thread:$0]  %s250, 256, %s252, %s239, 256, 128, 8
        $region24: #{tpu_custom_call.1} parent=19 // pred_fallthru
          _
        // Predicated region
        $region25: #{tpu_custom_call.1} parent=19 // pred_check
          %p258 = pneg %p111
        $region26: #{tpu_custom_call.1} parent=19 // pred_check_branch
          %260 = sbr.rel (%p258) target = $region28
        $region27: #{tpu_custom_call.1} parent=19 // pred_region
          %s261 = sand.u32 %s25, 1
          %s262 = scalar_lea.sflag [#allocation6], %s261
          %s263 = sand.u32 %s101, 1
          %s264 = smul.addr %s263, 1536
          %s265 = scalar_lea.vmem [#allocation7], %s264
          %s266 = smul.u32 4, %s32
          %s268 = ssub.s32 24576, 24576
          %269 = vsyncadd %s262, %s268
          %s270 = smul.addr %s266, 128
          %s271 = scalar_lea.hbm %s2, %s270
          %s272 = sshll.u32 %s265, 4
          %s273 = int_to_ptr.vmem [resolvable:$true] %s272
          %278 = dma.hbm_to_vmem [thread:$0]  %s271, 24576, %s273, %s262, 1024, 512, 32
        $region28: #{tpu_custom_call.1} parent=19 // pred_fallthru
          _
        // Predicated region
        $region29: #{tpu_custom_call.1} parent=19 // pred_check
          %p279 = pneg %p137
        $region30: #{tpu_custom_call.1} parent=19 // pred_check_branch
          %281 = sbr.rel (%p279) target = $region32
        $region31: #{tpu_custom_call.1} parent=19 // pred_region
          %s282 = sand.u32 %s127, 1
          %s283 = scalar_lea.sflag [#allocation9], %s282
          %s284 = sand.u32 %s127, 1
          %s285 = smul.addr %s284, 4
          %s286 = scalar_lea.vmem [#allocation8], %s285
          %s287 = smul.u32 4, %s32
          %s289 = ssub.s32 64, 64
          %290 = vsyncadd %s283, %s289
          %s291 = smul.addr %s287, 16
          %s292 = scalar_lea.hbm %s3, %s291
          %s294 = sshll.u32 %s286, 4
          %s295 = int_to_ptr.vmem [resolvable:$true] %s294
          %297 = dma.hbm_to_vmem [thread:$0]  %s292, 64, %s295, %s283
        $region32: #{tpu_custom_call.1} parent=19 // pred_fallthru
          _
      $region20: #{tpu_custom_call.1} parent=5 // pred_fallthru
        _
      %p298 = scmp.le.s32.totalorder 1, %s25
      %p299 = scmp.lt.s32.totalorder %s25, 3
      %p300 = pnand %p298, %p299
      %p301 = pneg %p300
      // Predicated region
      $region33: #{tpu_custom_call.1} parent=5 // pred_check
        _
      $region34: #{tpu_custom_call.1} parent=5 // pred_check_branch
        %303 = sbr.rel (%p300) target = $region36
      $region35: #{tpu_custom_call.1} parent=5 // pred_region
        %s304 = ssub.s32 %s25, 1
        // Predicated region
        $region37: #{tpu_custom_call.1} parent=35 // pred_check
          %p305 = pneg %p63
        $region38: #{tpu_custom_call.1} parent=35 // pred_check_branch
          %307 = sbr.rel (%p305) target = $region40
        $region39: #{tpu_custom_call.1} parent=35 // pred_region
          %308 = dma.done [#allocation3], 768
        $region40: #{tpu_custom_call.1} parent=35 // pred_fallthru
          _
        %s309 = sand.u32 %s30, 1
        %s310 = scalar_lea.sflag [#allocation6], %s309
        %s311 = sand.u32 %s78, 1
        %s312 = smul.addr %s311, 16
        %s313 = scalar_lea.vmem [#allocation5], %s312
        // Predicated region
        $region41: #{tpu_custom_call.1} parent=35 // pred_check
          %p314 = pneg %p91
        $region42: #{tpu_custom_call.1} parent=35 // pred_check_branch
          %316 = sbr.rel (%p314) target = $region44
        $region43: #{tpu_custom_call.1} parent=35 // pred_region
          %317 = dma.done %s310, 256
        $region44: #{tpu_custom_call.1} parent=35 // pred_fallthru
          _
        %s318 = sand.u32 %s30, 1
        %s319 = scalar_lea.sflag [#allocation6], %s318
        %s320 = sand.u32 %s104, 1
        %s321 = smul.addr %s320, 1536
        %s322 = scalar_lea.vmem [#allocation7], %s321
        // Predicated region
        $region45: #{tpu_custom_call.1} parent=35 // pred_check
          %p323 = pneg %p117
        $region46: #{tpu_custom_call.1} parent=35 // pred_check_branch
          %325 = sbr.rel (%p323) target = $region48
        $region47: #{tpu_custom_call.1} parent=35 // pred_region
          %326 = dma.done %s319, 24576
        $region48: #{tpu_custom_call.1} parent=35 // pred_fallthru
          _
        %s327 = sand.u32 %s130, 1
        %s328 = scalar_lea.sflag [#allocation9], %s327
        %s329 = sand.u32 %s130, 1
        %s330 = smul.addr %s329, 4
        %s331 = scalar_lea.vmem [#allocation8], %s330
        // Predicated region
        $region49: #{tpu_custom_call.1} parent=35 // pred_check
          %p332 = pneg %p143
        $region50: #{tpu_custom_call.1} parent=35 // pred_check_branch
          %334 = sbr.rel (%p332) target = $region52
        $region51: #{tpu_custom_call.1} parent=35 // pred_region
          %335 = dma.done %s328, 64
        $region52: #{tpu_custom_call.1} parent=35 // pred_fallthru
          _
        %p336 = pneg %p63
        %p337 = pneg %p60
        %s338 = sand.u32 %s30, 1
        %s339 = scalar_lea.sflag [#allocation6], %s338
        %s340 = sand.u32 %s78, 1
        %s341 = smul.addr %s340, 16
        %s342 = scalar_lea.vmem [#allocation5], %s341
        %p343 = pneg %p91
        %p344 = pneg %p88
        %s345 = sand.u32 %s30, 1
        %s346 = scalar_lea.sflag [#allocation6], %s345
        %s347 = sand.u32 %s104, 1
        %s348 = smul.addr %s347, 1536
        %s349 = scalar_lea.vmem [#allocation7], %s348
        %p350 = pneg %p117
        %p351 = pneg %p114
        %s352 = sand.u32 %s130, 1
        %s353 = scalar_lea.sflag [#allocation9], %s352
        %s354 = sand.u32 %s130, 1
        %s355 = smul.addr %s354, 4
        %s356 = scalar_lea.vmem [#allocation8], %s355
        %p357 = pneg %p143
        %p358 = pneg %p140
        %p359 = pneg %p171
        %p360 = pneg %p168
        %s361 = sand.u32 %s158, 1
        %s362 = scalar_lea.sflag [#allocation4], %s361
        %s363 = sand.u32 %s158, 1
        %s364 = smul.addr %s363, 16
        %s365 = scalar_lea.vmem [#allocation10], %s364
        %p366 = pneg %p199
        %p367 = pneg %p196
        %s368 = sand.u32 %s186, 1
        %s369 = scalar_lea.sflag [#allocation12], %s368
        %s370 = sand.u32 %s186, 1
        %s371 = smul.addr %s370, 16
        %s372 = scalar_lea.vmem [#allocation11], %s371
        %s373 = smul.u32 2, %s35
        %s374 = smul.u32 2, %s35
        %s375 = smul.u32 4, %s34
        %s376 = smul.u32 4, %s34
        %s377 = smul.u32 2, %s35
        %s378 = smul.u32 2, %s35
        %v379 = vld [vmem:[#allocation2] sm:$0xff]
        %v380 = vld [vmem:[#allocation2 + $0x8] sm:$0xff]
        %v381 = vld [vmem:[#allocation2 + $0x10] sm:$0xff]
        %v382 = vld [vmem:[#allocation2 + $0x18] sm:$0xff]
        %v383 = vld [vmem:[#allocation2 + $0x20] sm:$0xff]
        %v384 = vld [vmem:[#allocation2 + $0x28] sm:$0xff]
        %v385 = vld [vmem:[%s322] sm:$0xff]
        %v386 = vld [vmem:[%s322 + $0x8] sm:$0xff]
        %v387 = vld [vmem:[%s322 + $0x10] sm:$0xff]
        %v388 = vld [vmem:[%s322 + $0x18] sm:$0xff]
        %v389 = vld [vmem:[%s322 + $0x20] sm:$0xff]
        %v390 = vld [vmem:[%s322 + $0x28] sm:$0xff]
        %v391 = vld [vmem:[%s322 + $0x30] sm:$0xff]
        %v392 = vld [vmem:[%s322 + $0x38] sm:$0xff]
        %v393 = vld [vmem:[%s322 + $0x40] sm:$0xff]
        %v394 = vld [vmem:[%s322 + $0x48] sm:$0xff]
        %v395 = vld [vmem:[%s322 + $0x50] sm:$0xff]
        %v396 = vld [vmem:[%s322 + $0x58] sm:$0xff]
        %v397 = vld [vmem:[%s322 + $0x60] sm:$0xff]
        %v398 = vld [vmem:[%s322 + $0x68] sm:$0xff]
        %v399 = vld [vmem:[%s322 + $0x70] sm:$0xff]
        %v400 = vld [vmem:[%s322 + $0x78] sm:$0xff]
        %v401 = vld [vmem:[%s322 + $0x80] sm:$0xff]
        %v402 = vld [vmem:[%s322 + $0x88] sm:$0xff]
        %v403 = vld [vmem:[%s322 + $0x90] sm:$0xff]
        %v404 = vld [vmem:[%s322 + $0x98] sm:$0xff]
        %v405 = vld [vmem:[%s322 + $0xa0] sm:$0xff]
        %v406 = vld [vmem:[%s322 + $0xa8] sm:$0xff]
        %v407 = vld [vmem:[%s322 + $0xb0] sm:$0xff]
        %v408 = vld [vmem:[%s322 + $0xb8] sm:$0xff]
        %v409 = vld [vmem:[%s322 + $0xc0] sm:$0xff]
        %v410 = vld [vmem:[%s322 + $0xc8] sm:$0xff]
        %v411 = vld [vmem:[%s322 + $0xd0] sm:$0xff]
        %v412 = vld [vmem:[%s322 + $0xd8] sm:$0xff]
        %v413 = vld [vmem:[%s322 + $0xe0] sm:$0xff]
        %v414 = vld [vmem:[%s322 + $0xe8] sm:$0xff]
        %v415 = vld [vmem:[%s322 + $0xf0] sm:$0xff]
        %v416 = vld [vmem:[%s322 + $0xf8] sm:$0xff]
        %v417 = vld [vmem:[%s322 + $0x100] sm:$0xff]
        %v418 = vld [vmem:[%s322 + $0x108] sm:$0xff]
        %v419 = vld [vmem:[%s322 + $0x110] sm:$0xff]
        %v420 = vld [vmem:[%s322 + $0x118] sm:$0xff]
        %v421 = vld [vmem:[%s322 + $0x120] sm:$0xff]
        %v422 = vld [vmem:[%s322 + $0x128] sm:$0xff]
        %v423 = vld [vmem:[%s322 + $0x130] sm:$0xff]
        %v424 = vld [vmem:[%s322 + $0x138] sm:$0xff]
        %v425 = vld [vmem:[%s322 + $0x140] sm:$0xff]
        %v426 = vld [vmem:[%s322 + $0x148] sm:$0xff]
        %v427 = vld [vmem:[%s322 + $0x150] sm:$0xff]
        %v428 = vld [vmem:[%s322 + $0x158] sm:$0xff]
        %v429 = vld [vmem:[%s322 + $0x160] sm:$0xff]
        %v430 = vld [vmem:[%s322 + $0x168] sm:$0xff]
        %v431 = vld [vmem:[%s322 + $0x170] sm:$0xff]
        %v432 = vld [vmem:[%s322 + $0x178] sm:$0xff]
        %v433 = vld [vmem:[%s322 + $0x180] sm:$0xff]
        %v434 = vld [vmem:[%s322 + $0x188] sm:$0xff]
        %v435 = vld [vmem:[%s322 + $0x190] sm:$0xff]
        %v436 = vld [vmem:[%s322 + $0x198] sm:$0xff]
        %v437 = vld [vmem:[%s322 + $0x1a0] sm:$0xff]
        %v438 = vld [vmem:[%s322 + $0x1a8] sm:$0xff]
        %v439 = vld [vmem:[%s322 + $0x1b0] sm:$0xff]
        %v440 = vld [vmem:[%s322 + $0x1b8] sm:$0xff]
        %v441 = vld [vmem:[%s322 + $0x1c0] sm:$0xff]
        %v442 = vld [vmem:[%s322 + $0x1c8] sm:$0xff]
        %v443 = vld [vmem:[%s322 + $0x1d0] sm:$0xff]
        %v444 = vld [vmem:[%s322 + $0x1d8] sm:$0xff]
        %v445 = vld [vmem:[%s322 + $0x1e0] sm:$0xff]
        %v446 = vld [vmem:[%s322 + $0x1e8] sm:$0xff]
        %v447 = vld [vmem:[%s322 + $0x1f0] sm:$0xff]
        %v448 = vld [vmem:[%s322 + $0x1f8] sm:$0xff]
        %v449 = vld [vmem:[%s322 + $0x200] sm:$0xff]
        %v450 = vld [vmem:[%s322 + $0x208] sm:$0xff]
        %v451 = vld [vmem:[%s322 + $0x210] sm:$0xff]
        %v452 = vld [vmem:[%s322 + $0x218] sm:$0xff]
        %v453 = vld [vmem:[%s322 + $0x220] sm:$0xff]
        %v454 = vld [vmem:[%s322 + $0x228] sm:$0xff]
        %v455 = vld [vmem:[%s322 + $0x230] sm:$0xff]
        %v456 = vld [vmem:[%s322 + $0x238] sm:$0xff]
        %v457 = vld [vmem:[%s322 + $0x240] sm:$0xff]
        %v458 = vld [vmem:[%s322 + $0x248] sm:$0xff]
        %v459 = vld [vmem:[%s322 + $0x250] sm:$0xff]
        %v460 = vld [vmem:[%s322 + $0x258] sm:$0xff]
        %v461 = vld [vmem:[%s322 + $0x260] sm:$0xff]
        %v462 = vld [vmem:[%s322 + $0x268] sm:$0xff]
        %v463 = vld [vmem:[%s322 + $0x270] sm:$0xff]
        %v464 = vld [vmem:[%s322 + $0x278] sm:$0xff]
        %v465 = vld [vmem:[%s322 + $0x280] sm:$0xff]
        %v466 = vld [vmem:[%s322 + $0x288] sm:$0xff]
        %v467 = vld [vmem:[%s322 + $0x290] sm:$0xff]
        %v468 = vld [vmem:[%s322 + $0x298] sm:$0xff]
        %v469 = vld [vmem:[%s322 + $0x2a0] sm:$0xff]
        %v470 = vld [vmem:[%s322 + $0x2a8] sm:$0xff]
        %v471 = vld [vmem:[%s322 + $0x2b0] sm:$0xff]
        %v472 = vld [vmem:[%s322 + $0x2b8] sm:$0xff]
        %v473 = vld [vmem:[%s322 + $0x2c0] sm:$0xff]
        %v474 = vld [vmem:[%s322 + $0x2c8] sm:$0xff]
        %v475 = vld [vmem:[%s322 + $0x2d0] sm:$0xff]
        %v476 = vld [vmem:[%s322 + $0x2d8] sm:$0xff]
        %v477 = vld [vmem:[%s322 + $0x2e0] sm:$0xff]
        %v478 = vld [vmem:[%s322 + $0x2e8] sm:$0xff]
        %v479 = vld [vmem:[%s322 + $0x2f0] sm:$0xff]
        %v480 = vld [vmem:[%s322 + $0x2f8] sm:$0xff]
        %v481 = vld [vmem:[%s322 + $0x300] sm:$0xff]
        %v482 = vld [vmem:[%s322 + $0x308] sm:$0xff]
        %v483 = vld [vmem:[%s322 + $0x310] sm:$0xff]
        %v484 = vld [vmem:[%s322 + $0x318] sm:$0xff]
        %v485 = vld [vmem:[%s322 + $0x320] sm:$0xff]
        %v486 = vld [vmem:[%s322 + $0x328] sm:$0xff]
        %v487 = vld [vmem:[%s322 + $0x330] sm:$0xff]
        %v488 = vld [vmem:[%s322 + $0x338] sm:$0xff]
        %v489 = vld [vmem:[%s322 + $0x340] sm:$0xff]
        %v490 = vld [vmem:[%s322 + $0x348] sm:$0xff]
        %v491 = vld [vmem:[%s322 + $0x350] sm:$0xff]
        %v492 = vld [vmem:[%s322 + $0x358] sm:$0xff]
        %v493 = vld [vmem:[%s322 + $0x360] sm:$0xff]
        %v494 = vld [vmem:[%s322 + $0x368] sm:$0xff]
        %v495 = vld [vmem:[%s322 + $0x370] sm:$0xff]
        %v496 = vld [vmem:[%s322 + $0x378] sm:$0xff]
        %v497 = vld [vmem:[%s322 + $0x380] sm:$0xff]
        %v498 = vld [vmem:[%s322 + $0x388] sm:$0xff]
        %v499 = vld [vmem:[%s322 + $0x390] sm:$0xff]
        %v500 = vld [vmem:[%s322 + $0x398] sm:$0xff]
        %v501 = vld [vmem:[%s322 + $0x3a0] sm:$0xff]
        %v502 = vld [vmem:[%s322 + $0x3a8] sm:$0xff]
        %v503 = vld [vmem:[%s322 + $0x3b0] sm:$0xff]
        %v504 = vld [vmem:[%s322 + $0x3b8] sm:$0xff]
        %v505 = vld [vmem:[%s322 + $0x3c0] sm:$0xff]
        %v506 = vld [vmem:[%s322 + $0x3c8] sm:$0xff]
        %v507 = vld [vmem:[%s322 + $0x3d0] sm:$0xff]
        %v508 = vld [vmem:[%s322 + $0x3d8] sm:$0xff]
        %v509 = vld [vmem:[%s322 + $0x3e0] sm:$0xff]
        %v510 = vld [vmem:[%s322 + $0x3e8] sm:$0xff]
        %v511 = vld [vmem:[%s322 + $0x3f0] sm:$0xff]
        %v512 = vld [vmem:[%s322 + $0x3f8] sm:$0xff]
        %v513 = vld [vmem:[%s322 + $0x400] sm:$0xff]
        %v514 = vld [vmem:[%s322 + $0x408] sm:$0xff]
        %v515 = vld [vmem:[%s322 + $0x410] sm:$0xff]
        %v516 = vld [vmem:[%s322 + $0x418] sm:$0xff]
        %v517 = vld [vmem:[%s322 + $0x420] sm:$0xff]
        %v518 = vld [vmem:[%s322 + $0x428] sm:$0xff]
        %v519 = vld [vmem:[%s322 + $0x430] sm:$0xff]
        %v520 = vld [vmem:[%s322 + $0x438] sm:$0xff]
        %v521 = vld [vmem:[%s322 + $0x440] sm:$0xff]
        %v522 = vld [vmem:[%s322 + $0x448] sm:$0xff]
        %v523 = vld [vmem:[%s322 + $0x450] sm:$0xff]
        %v524 = vld [vmem:[%s322 + $0x458] sm:$0xff]
        %v525 = vld [vmem:[%s322 + $0x460] sm:$0xff]
        %v526 = vld [vmem:[%s322 + $0x468] sm:$0xff]
        %v527 = vld [vmem:[%s322 + $0x470] sm:$0xff]
        %v528 = vld [vmem:[%s322 + $0x478] sm:$0xff]
        %v529 = vld [vmem:[%s322 + $0x480] sm:$0xff]
        %v530 = vld [vmem:[%s322 + $0x488] sm:$0xff]
        %v531 = vld [vmem:[%s322 + $0x490] sm:$0xff]
        %v532 = vld [vmem:[%s322 + $0x498] sm:$0xff]
        %v533 = vld [vmem:[%s322 + $0x4a0] sm:$0xff]
        %v534 = vld [vmem:[%s322 + $0x4a8] sm:$0xff]
        %v535 = vld [vmem:[%s322 + $0x4b0] sm:$0xff]
        %v536 = vld [vmem:[%s322 + $0x4b8] sm:$0xff]
        %v537 = vld [vmem:[%s322 + $0x4c0] sm:$0xff]
        %v538 = vld [vmem:[%s322 + $0x4c8] sm:$0xff]
        %v539 = vld [vmem:[%s322 + $0x4d0] sm:$0xff]
        %v540 = vld [vmem:[%s322 + $0x4d8] sm:$0xff]
        %v541 = vld [vmem:[%s322 + $0x4e0] sm:$0xff]
        %v542 = vld [vmem:[%s322 + $0x4e8] sm:$0xff]
        %v543 = vld [vmem:[%s322 + $0x4f0] sm:$0xff]
        %v544 = vld [vmem:[%s322 + $0x4f8] sm:$0xff]
        %v545 = vld [vmem:[%s322 + $0x500] sm:$0xff]
        %v546 = vld [vmem:[%s322 + $0x508] sm:$0xff]
        %v547 = vld [vmem:[%s322 + $0x510] sm:$0xff]
        %v548 = vld [vmem:[%s322 + $0x518] sm:$0xff]
        %v549 = vld [vmem:[%s322 + $0x520] sm:$0xff]
        %v550 = vld [vmem:[%s322 + $0x528] sm:$0xff]
        %v551 = vld [vmem:[%s322 + $0x530] sm:$0xff]
        %v552 = vld [vmem:[%s322 + $0x538] sm:$0xff]
        %v553 = vld [vmem:[%s322 + $0x540] sm:$0xff]
        %v554 = vld [vmem:[%s322 + $0x548] sm:$0xff]
        %v555 = vld [vmem:[%s322 + $0x550] sm:$0xff]
        %v556 = vld [vmem:[%s322 + $0x558] sm:$0xff]
        %v557 = vld [vmem:[%s322 + $0x560] sm:$0xff]
        %v558 = vld [vmem:[%s322 + $0x568] sm:$0xff]
        %v559 = vld [vmem:[%s322 + $0x570] sm:$0xff]
        %v560 = vld [vmem:[%s322 + $0x578] sm:$0xff]
        %v561 = vld [vmem:[%s322 + $0x580] sm:$0xff]
        %v562 = vld [vmem:[%s322 + $0x588] sm:$0xff]
        %v563 = vld [vmem:[%s322 + $0x590] sm:$0xff]
        %v564 = vld [vmem:[%s322 + $0x598] sm:$0xff]
        %v565 = vld [vmem:[%s322 + $0x5a0] sm:$0xff]
        %v566 = vld [vmem:[%s322 + $0x5a8] sm:$0xff]
        %v567 = vld [vmem:[%s322 + $0x5b0] sm:$0xff]
        %v568 = vld [vmem:[%s322 + $0x5b8] sm:$0xff]
        %v569 = vld [vmem:[%s322 + $0x5c0] sm:$0xff]
        %v570 = vld [vmem:[%s322 + $0x5c8] sm:$0xff]
        %v571 = vld [vmem:[%s322 + $0x5d0] sm:$0xff]
        %v572 = vld [vmem:[%s322 + $0x5d8] sm:$0xff]
        %v573 = vld [vmem:[%s322 + $0x5e0] sm:$0xff]
        %v574 = vld [vmem:[%s322 + $0x5e8] sm:$0xff]
        %v575 = vld [vmem:[%s322 + $0x5f0] sm:$0xff]
        %v576 = vld [vmem:[%s322 + $0x5f8] sm:$0xff]
        %v577 = vld [vmem:[%s331] sm:$0xf]
        %v579 = vlaneseq
        %v580 = vshrl.u32 %v579, 7
        %v581 = vsub.s32 0, %v580
        %v582 = vrot.slane %v577, %v581
        %v583 = vlaneseq
        %v584 = vshrl.u32 %v583, 7
        %v585 = vsub.s32 1, %v584
        %v586 = vrot.slane %v577, %v585
        %v587 = vlaneseq
        %v588 = vshrl.u32 %v587, 7
        %v589 = vsub.s32 2, %v588
        %v590 = vrot.slane %v577, %v589
        %v591 = vlaneseq
        %v592 = vshrl.u32 %v591, 7
        %v593 = vsub.s32 3, %v592
        %v594 = vrot.slane %v577, %v593
        %599 = vmatprep.subr.mxu0 %v446
        %600 = vmatpush1.msra.mxu0 %v445
        %601 = vmatprep.subr.mxu0 %v442
        %602 = vmatpush1.msra.mxu0 %v441
        %603 = vmatprep.subr.mxu0 %v438
        %604 = vmatpush1.msra.mxu0 %v437
        %605 = vmatprep.subr.mxu0 %v434
        %606 = vmatpush1.msra.mxu0 %v433
        %607 = vmatprep.subr.mxu0 %v430
        %608 = vmatpush1.msra.mxu0 %v429
        %609 = vmatprep.subr.mxu0 %v426
        %610 = vmatpush1.msra.mxu0 %v425
        %611 = vmatprep.subr.mxu0 %v422
        %612 = vmatpush1.msra.mxu0 %v421
        %613 = vmatprep.subr.mxu0 %v418
        %614 = vmatpush1.msra.mxu0 %v417
        %615 = vmatprep.subr.mxu0 %v414
        %616 = vmatpush1.msra.mxu0 %v413
        %617 = vmatprep.subr.mxu0 %v410
        %618 = vmatpush1.msra.mxu0 %v409
        %619 = vmatprep.subr.mxu0 %v406
        %620 = vmatpush1.msra.mxu0 %v405
        %621 = vmatprep.subr.mxu0 %v402
        %622 = vmatpush1.msra.mxu0 %v401
        %623 = vmatprep.subr.mxu0 %v398
        %624 = vmatpush1.msra.mxu0 %v397
        %625 = vmatprep.subr.mxu0 %v394
        %626 = vmatpush1.msra.mxu0 %v393
        %627 = vmatprep.subr.mxu0 %v390
        %628 = vmatpush1.msra.mxu0 %v389
        %629 = vmatprep.subr.mxu0 %v386
        %630 = vmatpush1.msra.mxu0 %v385
        %631 = vmatprep.subr.mxu0 %v510
        %632 = vmatpush2.msra.mxu0 %v509
        %633 = vmatprep.subr.mxu0 %v506
        %634 = vmatpush2.msra.mxu0 %v505
        %635 = vmatprep.subr.mxu0 %v502
        %636 = vmatpush2.msra.mxu0 %v501
        %637 = vmatprep.subr.mxu0 %v498
        %638 = vmatpush2.msra.mxu0 %v497
        %639 = vmatprep.subr.mxu0 %v494
        %640 = vmatpush2.msra.mxu0 %v493
        %641 = vmatprep.subr.mxu0 %v490
        %642 = vmatpush2.msra.mxu0 %v489
        %643 = vmatprep.subr.mxu0 %v486
        %644 = vmatpush2.msra.mxu0 %v485
        %645 = vmatprep.subr.mxu0 %v482
        %646 = vmatpush2.msra.mxu0 %v481
        %647 = vmatprep.subr.mxu0 %v478
        %648 = vmatpush2.msra.mxu0 %v477
        %649 = vmatprep.subr.mxu0 %v474
        %650 = vmatpush2.msra.mxu0 %v473
        %651 = vmatprep.subr.mxu0 %v470
        %652 = vmatpush2.msra.mxu0 %v469
        %653 = vmatprep.subr.mxu0 %v466
        %654 = vmatpush2.msra.mxu0 %v465
        %655 = vmatprep.subr.mxu0 %v462
        %656 = vmatpush2.msra.mxu0 %v461
        %657 = vmatprep.subr.mxu0 %v458
        %658 = vmatpush2.msra.mxu0 %v457
        %659 = vmatprep.subr.mxu0 %v454
        %660 = vmatpush2.msra.mxu0 %v453
        %661 = vmatprep.subr.mxu0 %v450
        %662 = vmatpush2.msra.mxu0 %v449
        %663 = vmatprep.mubr.f32.mxu0 %v380
        %664 = vmatmul.mubr.f32.gmra.mxu0 %v379
        %v665 = vpop.f32.mrf.mxu0
        %v666 = vadd.f32 %v582, %v665
        %v667 = vpop.f32.mrf.mxu0
        %v668 = vadd.f32 %v586, %v667
        %669 = vmatprep.mubr.f32.mxu0 %v383
        %670 = vmatmul.mubr.f32.gmra.mxu0 %v382
        %v671 = vpop.f32.mrf.mxu0
        %v672 = vadd.f32 %v582, %v671
        %v673 = vpop.f32.mrf.mxu0
        %v674 = vadd.f32 %v586, %v673
        %675 = vdwg.mxu0
        %676 = vmatprep.subr.mxu0 %v574
        %677 = vmatpush1.msra.mxu0 %v573
        %678 = vmatprep.subr.mxu0 %v570
        %679 = vmatpush1.msra.mxu0 %v569
        %680 = vmatprep.subr.mxu0 %v566
        %681 = vmatpush1.msra.mxu0 %v565
        %682 = vmatprep.subr.mxu0 %v562
        %683 = vmatpush1.msra.mxu0 %v561
        %684 = vmatprep.subr.mxu0 %v558
        %685 = vmatpush1.msra.mxu0 %v557
        %686 = vmatprep.subr.mxu0 %v554
        %687 = vmatpush1.msra.mxu0 %v553
        %688 = vmatprep.subr.mxu0 %v550
        %689 = vmatpush1.msra.mxu0 %v549
        %690 = vmatprep.subr.mxu0 %v546
        %691 = vmatpush1.msra.mxu0 %v545
        %692 = vmatprep.subr.mxu0 %v542
        %693 = vmatpush1.msra.mxu0 %v541
        %694 = vmatprep.subr.mxu0 %v538
        %695 = vmatpush1.msra.mxu0 %v537
        %696 = vmatprep.subr.mxu0 %v534
        %697 = vmatpush1.msra.mxu0 %v533
        %698 = vmatprep.subr.mxu0 %v530
        %699 = vmatpush1.msra.mxu0 %v529
        %700 = vmatprep.subr.mxu0 %v526
        %701 = vmatpush1.msra.mxu0 %v525
        %702 = vmatprep.subr.mxu0 %v522
        %703 = vmatpush1.msra.mxu0 %v521
        %704 = vmatprep.subr.mxu0 %v518
        %705 = vmatpush1.msra.mxu0 %v517
        %706 = vmatprep.subr.mxu0 %v514
        %707 = vmatpush1.msra.mxu0 %v513
        %708 = vmatprep.subr.mxu0 0.0
        %709 = vmatpush2.msra.mxu0 0.0
        %710 = vmatprep.subr.mxu0 0.0
        %711 = vmatpush2.msra.mxu0 0.0
        %712 = vmatprep.subr.mxu0 0.0
        %713 = vmatpush2.msra.mxu0 0.0
        %714 = vmatprep.subr.mxu0 0.0
        %715 = vmatpush2.msra.mxu0 0.0
        %716 = vmatprep.subr.mxu0 0.0
        %717 = vmatpush2.msra.mxu0 0.0
        %718 = vmatprep.subr.mxu0 0.0
        %719 = vmatpush2.msra.mxu0 0.0
        %720 = vmatprep.subr.mxu0 0.0
        %721 = vmatpush2.msra.mxu0 0.0
        %722 = vmatprep.subr.mxu0 0.0
        %723 = vmatpush2.msra.mxu0 0.0
        %724 = vmatprep.subr.mxu0 0.0
        %725 = vmatpush2.msra.mxu0 0.0
        %726 = vmatprep.subr.mxu0 0.0
        %727 = vmatpush2.msra.mxu0 0.0
        %728 = vmatprep.subr.mxu0 0.0
        %729 = vmatpush2.msra.mxu0 0.0
        %730 = vmatprep.subr.mxu0 0.0
        %731 = vmatpush2.msra.mxu0 0.0
        %732 = vmatprep.subr.mxu0 0.0
        %733 = vmatpush2.msra.mxu0 0.0
        %734 = vmatprep.subr.mxu0 0.0
        %735 = vmatpush2.msra.mxu0 0.0
        %736 = vmatprep.subr.mxu0 0.0
        %737 = vmatpush2.msra.mxu0 0.0
        %738 = vmatprep.subr.mxu0 0.0
        %739 = vmatpush2.msra.mxu0 0.0
        %740 = vmatprep.mubr.f32.mxu0 0.0
        %741 = vmatmul.mubr.f32.gmra.mxu0 %v381
        %v742 = vpop.f32.mrf.mxu0
        %v743 = vadd.f32 %v666, %v742
        %v744 = vpop.f32.mrf.mxu0
        %v745 = vadd.f32 %v668, %v744
        %746 = vmatprep.mubr.f32.mxu0 0.0
        %747 = vmatmul.mubr.f32.gmra.mxu0 %v384
        %v748 = vpop.f32.mrf.mxu0
        %v749 = vadd.f32 %v672, %v748
        %v750 = vpop.f32.mrf.mxu0
        %v751 = vadd.f32 %v674, %v750
        %752 = vdwg.mxu0
        %753 = vmatprep.subr.mxu0 %v448
        %754 = vmatpush1.msra.mxu0 %v447
        %755 = vmatprep.subr.mxu0 %v444
        %756 = vmatpush1.msra.mxu0 %v443
        %757 = vmatprep.subr.mxu0 %v440
        %758 = vmatpush1.msra.mxu0 %v439
        %759 = vmatprep.subr.mxu0 %v436
        %760 = vmatpush1.msra.mxu0 %v435
        %761 = vmatprep.subr.mxu0 %v432
        %762 = vmatpush1.msra.mxu0 %v431
        %763 = vmatprep.subr.mxu0 %v428
        %764 = vmatpush1.msra.mxu0 %v427
        %765 = vmatprep.subr.mxu0 %v424
        %766 = vmatpush1.msra.mxu0 %v423
        %767 = vmatprep.subr.mxu0 %v420
        %768 = vmatpush1.msra.mxu0 %v419
        %769 = vmatprep.subr.mxu0 %v416
        %770 = vmatpush1.msra.mxu0 %v415
        %771 = vmatprep.subr.mxu0 %v412
        %772 = vmatpush1.msra.mxu0 %v411
        %773 = vmatprep.subr.mxu0 %v408
        %774 = vmatpush1.msra.mxu0 %v407
        %775 = vmatprep.subr.mxu0 %v404
        %776 = vmatpush1.msra.mxu0 %v403
        %777 = vmatprep.subr.mxu0 %v400
        %778 = vmatpush1.msra.mxu0 %v399
        %779 = vmatprep.subr.mxu0 %v396
        %780 = vmatpush1.msra.mxu0 %v395
        %781 = vmatprep.subr.mxu0 %v392
        %782 = vmatpush1.msra.mxu0 %v391
        %783 = vmatprep.subr.mxu0 %v388
        %784 = vmatpush1.msra.mxu0 %v387
        %785 = vmatprep.subr.mxu0 %v512
        %786 = vmatpush2.msra.mxu0 %v511
        %787 = vmatprep.subr.mxu0 %v508
        %788 = vmatpush2.msra.mxu0 %v507
        %789 = vmatprep.subr.mxu0 %v504
        %790 = vmatpush2.msra.mxu0 %v503
        %791 = vmatprep.subr.mxu0 %v500
        %792 = vmatpush2.msra.mxu0 %v499
        %793 = vmatprep.subr.mxu0 %v496
        %794 = vmatpush2.msra.mxu0 %v495
        %795 = vmatprep.subr.mxu0 %v492
        %796 = vmatpush2.msra.mxu0 %v491
        %797 = vmatprep.subr.mxu0 %v488
        %798 = vmatpush2.msra.mxu0 %v487
        %799 = vmatprep.subr.mxu0 %v484
        %800 = vmatpush2.msra.mxu0 %v483
        %801 = vmatprep.subr.mxu0 %v480
        %802 = vmatpush2.msra.mxu0 %v479
        %803 = vmatprep.subr.mxu0 %v476
        %804 = vmatpush2.msra.mxu0 %v475
        %805 = vmatprep.subr.mxu0 %v472
        %806 = vmatpush2.msra.mxu0 %v471
        %807 = vmatprep.subr.mxu0 %v468
        %808 = vmatpush2.msra.mxu0 %v467
        %809 = vmatprep.subr.mxu0 %v464
        %810 = vmatpush2.msra.mxu0 %v463
        %811 = vmatprep.subr.mxu0 %v460
        %812 = vmatpush2.msra.mxu0 %v459
        %813 = vmatprep.subr.mxu0 %v456
        %814 = vmatpush2.msra.mxu0 %v455
        %815 = vmatprep.subr.mxu0 %v452
        %816 = vmatpush2.msra.mxu0 %v451
        %817 = vmatprep.mubr.f32.mxu0 %v380
        %818 = vmatmul.mubr.f32.gmra.mxu0 %v379
        %v819 = vpop.f32.mrf.mxu0
        %v820 = vadd.f32 %v590, %v819
        %v821 = vpop.f32.mrf.mxu0
        %v822 = vadd.f32 %v594, %v821
        %823 = vmatprep.mubr.f32.mxu0 %v383
        %824 = vmatmul.mubr.f32.gmra.mxu0 %v382
        %v825 = vpop.f32.mrf.mxu0
        %v826 = vadd.f32 %v590, %v825
        %v827 = vpop.f32.mrf.mxu0
        %v828 = vadd.f32 %v594, %v827
        %829 = vdwg.mxu0
        %830 = vmatprep.subr.mxu0 %v576
        %831 = vmatpush1.msra.mxu0 %v575
        %832 = vmatprep.subr.mxu0 %v572
        %833 = vmatpush1.msra.mxu0 %v571
        %834 = vmatprep.subr.mxu0 %v568
        %835 = vmatpush1.msra.mxu0 %v567
        %836 = vmatprep.subr.mxu0 %v564
        %837 = vmatpush1.msra.mxu0 %v563
        %838 = vmatprep.subr.mxu0 %v560
        %839 = vmatpush1.msra.mxu0 %v559
        %840 = vmatprep.subr.mxu0 %v556
        %841 = vmatpush1.msra.mxu0 %v555
        %842 = vmatprep.subr.mxu0 %v552
        %843 = vmatpush1.msra.mxu0 %v551
        %844 = vmatprep.subr.mxu0 %v548
        %845 = vmatpush1.msra.mxu0 %v547
        %846 = vmatprep.subr.mxu0 %v544
        %847 = vmatpush1.msra.mxu0 %v543
        %848 = vmatprep.subr.mxu0 %v540
        %849 = vmatpush1.msra.mxu0 %v539
        %850 = vmatprep.subr.mxu0 %v536
        %851 = vmatpush1.msra.mxu0 %v535
        %852 = vmatprep.subr.mxu0 %v532
        %853 = vmatpush1.msra.mxu0 %v531
        %854 = vmatprep.subr.mxu0 %v528
        %855 = vmatpush1.msra.mxu0 %v527
        %856 = vmatprep.subr.mxu0 %v524
        %857 = vmatpush1.msra.mxu0 %v523
        %858 = vmatprep.subr.mxu0 %v520
        %859 = vmatpush1.msra.mxu0 %v519
        %860 = vmatprep.subr.mxu0 %v516
        %861 = vmatpush1.msra.mxu0 %v515
        %862 = vmatprep.subr.mxu0 0.0
        %863 = vmatpush2.msra.mxu0 0.0
        %864 = vmatprep.subr.mxu0 0.0
        %865 = vmatpush2.msra.mxu0 0.0
        %866 = vmatprep.subr.mxu0 0.0
        %867 = vmatpush2.msra.mxu0 0.0
        %868 = vmatprep.subr.mxu0 0.0
        %869 = vmatpush2.msra.mxu0 0.0
        %870 = vmatprep.subr.mxu0 0.0
        %871 = vmatpush2.msra.mxu0 0.0
        %872 = vmatprep.subr.mxu0 0.0
        %873 = vmatpush2.msra.mxu0 0.0
        %874 = vmatprep.subr.mxu0 0.0
        %875 = vmatpush2.msra.mxu0 0.0
        %876 = vmatprep.subr.mxu0 0.0
        %877 = vmatpush2.msra.mxu0 0.0
        %878 = vmatprep.subr.mxu0 0.0
        %879 = vmatpush2.msra.mxu0 0.0
        %880 = vmatprep.subr.mxu0 0.0
        %881 = vmatpush2.msra.mxu0 0.0
        %882 = vmatprep.subr.mxu0 0.0
        %883 = vmatpush2.msra.mxu0 0.0
        %884 = vmatprep.subr.mxu0 0.0
        %885 = vmatpush2.msra.mxu0 0.0
        %886 = vmatprep.subr.mxu0 0.0
        %887 = vmatpush2.msra.mxu0 0.0
        %888 = vmatprep.subr.mxu0 0.0
        %889 = vmatpush2.msra.mxu0 0.0
        %890 = vmatprep.subr.mxu0 0.0
        %891 = vmatpush2.msra.mxu0 0.0
        %892 = vmatprep.subr.mxu0 0.0
        %893 = vmatpush2.msra.mxu0 0.0
        %894 = vmatprep.mubr.f32.mxu0 0.0
        %895 = vmatmul.mubr.f32.gmra.mxu0 %v381
        %v896 = vpop.f32.mrf.mxu0
        %v897 = vadd.f32 %v820, %v896
        %v898 = vpop.f32.mrf.mxu0
        %v899 = vadd.f32 %v822, %v898
        %900 = vmatprep.mubr.f32.mxu0 0.0
        %901 = vmatmul.mubr.f32.gmra.mxu0 %v384
        %v902 = vpop.f32.mrf.mxu0
        %v903 = vadd.f32 %v826, %v902
        %v904 = vpop.f32.mrf.mxu0
        %v905 = vadd.f32 %v828, %v904
        %906 = vdwg.mxu0
        %v907 = vld [vmem:[%s313] sm:$0xff]
        %v908 = vld [vmem:[%s313 + $0x8] sm:$0xff]
        %v909 = vmul.f32 %v745, 0.5
        %v910 = vmul.f32 %v751, 0.5
        %v911 = vtanh.pop %v909
        %v912 = vtanh.pop %v910
        %v913 = vadd.f32 %v911, 1.0
        %v914 = vadd.f32 %v912, 1.0
        %v915 = vmul.f32 %v913, 0.5
        %v916 = vmul.f32 %v914, 0.5
        %v917 = vmul.f32 %v915, %v907
        %v918 = vmul.f32 %v916, %v908
        %v919 = vmul.f32 %v743, 0.5
        %v920 = vmul.f32 %v749, 0.5
        %v921 = vtanh.pop %v919
        %v922 = vtanh.pop %v920
        %v923 = vadd.f32 %v921, 1.0
        %v924 = vadd.f32 %v922, 1.0
        %v925 = vmul.f32 %v923, 0.5
        %v926 = vmul.f32 %v924, 0.5
        %v927 = vtanh.pop %v897
        %v928 = vtanh.pop %v903
        %v929 = vmul.f32 %v925, %v927
        %v930 = vmul.f32 %v926, %v928
        %v931 = vadd.f32 %v917, %v929
        %v932 = vadd.f32 %v918, %v930
        %v933 = vmul.f32 %v899, 0.5
        %v934 = vmul.f32 %v905, 0.5
        %v935 = vtanh.pop %v933
        %v936 = vtanh.pop %v934
        %v937 = vadd.f32 %v935, 1.0
        %v938 = vadd.f32 %v936, 1.0
        %v939 = vmul.f32 %v937, 0.5
        %v940 = vmul.f32 %v938, 0.5
        %v941 = vtanh.pop %v931
        %v942 = vtanh.pop %v932
        %v943 = vmul.f32 %v939, %v941
        %v944 = vmul.f32 %v940, %v942
        %945 = vst [vmem:[%s365] sm:$0xff] %v943
        %946 = vst [vmem:[%s365 + $0x8] sm:$0xff] %v944
        %947 = vst [vmem:[%s372] sm:$0xff] %v931
        %948 = vst [vmem:[%s372 + $0x8] sm:$0xff] %v932
        %s949 = sand.u32 %s158, 1
        %s950 = scalar_lea.sflag [#allocation4], %s949
        %s951 = sand.u32 %s158, 1
        %s952 = smul.addr %s951, 16
        %s953 = scalar_lea.vmem [#allocation10], %s952
        %s954 = sand.u32 %s186, 1
        %s955 = scalar_lea.sflag [#allocation12], %s954
        %s956 = sand.u32 %s186, 1
        %s957 = smul.addr %s956, 16
        %s958 = scalar_lea.vmem [#allocation11], %s957
        // Predicated region
        $region53: #{tpu_custom_call.1} parent=35 // pred_check
          %p959 = pneg %p168
        $region54: #{tpu_custom_call.1} parent=35 // pred_check_branch
          %961 = sbr.rel (%p959) target = $region56
        $region55: #{tpu_custom_call.1} parent=35 // pred_region
          %s962 = smul.u32 2, %s35
          %s964 = ssub.s32 256, 256
          %965 = vsyncadd %s950, %s964
          %s966 = smul.addr %s962, 2
          %s967 = sadd.s32 %s34, %s966
          %s968 = smul.addr %s967, 128
          %s969 = scalar_lea.hbm %s4, %s968
          %s970 = sshll.u32 %s953, 4
          %s971 = int_to_ptr.vmem [resolvable:$true] %s970
          %976 = dma.vmem_to_hbm [thread:$0]  %s971, 256, %s969, %s950, 128, 256, 8
        $region56: #{tpu_custom_call.1} parent=35 // pred_fallthru
          _
        // Predicated region
        $region57: #{tpu_custom_call.1} parent=35 // pred_check
          %p977 = pneg %p196
        $region58: #{tpu_custom_call.1} parent=35 // pred_check_branch
          %979 = sbr.rel (%p977) target = $region60
        $region59: #{tpu_custom_call.1} parent=35 // pred_region
          %s980 = smul.u32 2, %s35
          %s982 = ssub.s32 256, 256
          %983 = vsyncadd %s955, %s982
          %s984 = smul.addr %s980, 2
          %s985 = sadd.s32 %s34, %s984
          %s986 = smul.addr %s985, 128
          %s987 = scalar_lea.hbm %s5, %s986
          %s988 = sshll.u32 %s958, 4
          %s989 = int_to_ptr.vmem [resolvable:$true] %s988
          %994 = dma.vmem_to_hbm [thread:$0]  %s989, 256, %s987, %s955, 128, 256, 8
        $region60: #{tpu_custom_call.1} parent=35 // pred_fallthru
          _
      $region36: #{tpu_custom_call.1} parent=5 // pred_fallthru
        _
      %p995 = scmp.le.s32.totalorder 2, %s25
      // Predicated region
      $region61: #{tpu_custom_call.1} parent=5 // pred_check
        %p996 = pneg %p995
      $region62: #{tpu_custom_call.1} parent=5 // pred_check_branch
        %998 = sbr.rel (%p996) target = $region64
      $region63: #{tpu_custom_call.1} parent=5 // pred_region
        %s999 = ssub.s32 %s25, 2
        // Predicated region
        $region65: #{tpu_custom_call.1} parent=63 // pred_check
          %p1000 = pneg %p174
        $region66: #{tpu_custom_call.1} parent=63 // pred_check_branch
          %1002 = sbr.rel (%p1000) target = $region68
        $region67: #{tpu_custom_call.1} parent=63 // pred_region
          %s1003 = sand.u32 %s159, 1
          %s1004 = scalar_lea.sflag [#allocation4], %s1003
          %s1005 = sand.u32 %s159, 1
          %s1006 = smul.addr %s1005, 16
          %s1007 = scalar_lea.vmem [#allocation10], %s1006
          %1008 = dma.done %s1004, 256
        $region68: #{tpu_custom_call.1} parent=63 // pred_fallthru
          _
        // Predicated region
        $region69: #{tpu_custom_call.1} parent=63 // pred_check
          %p1009 = pneg %p202
        $region70: #{tpu_custom_call.1} parent=63 // pred_check_branch
          %1011 = sbr.rel (%p1009) target = $region72
        $region71: #{tpu_custom_call.1} parent=63 // pred_region
          %s1012 = sand.u32 %s187, 1
          %s1013 = scalar_lea.sflag [#allocation12], %s1012
          %s1014 = sand.u32 %s187, 1
          %s1015 = smul.addr %s1014, 16
          %s1016 = scalar_lea.vmem [#allocation11], %s1015
          %1017 = dma.done %s1013, 256
        $region72: #{tpu_custom_call.1} parent=63 // pred_fallthru
          _
      $region64: #{tpu_custom_call.1} parent=5 // pred_fallthru
        _
    $region6: #{tpu_custom_call.1} parent=1 // loop_footer
      %s29 = sadd.s32 1, %s25
    $region7: #{tpu_custom_call.1} parent=1 // loop_footer_branch
      %24 = sbr.rel target = $region3
    $region8: #{tpu_custom_call.1} parent=1 // loop_exit
      _
    %1018 = vsyncpa [#allocation3], 1
    %s1019 = scalar_lea.sflag [#allocation3], 1
    %1020 = vsyncpa %s1019, 1
    %1021 = vsyncpa [#allocation6], 1
    %s1022 = scalar_lea.sflag [#allocation6], 1
    %1023 = vsyncpa %s1022, 1
    %1024 = vsyncpa [#allocation9], 1
    %s1025 = scalar_lea.sflag [#allocation9], 1
    %1026 = vsyncpa %s1025, 1
    %1027 = vsyncpa [#allocation4], 1
    %s1028 = scalar_lea.sflag [#allocation4], 1
    %1029 = vsyncpa %s1028, 1
    %1030 = vsyncpa [#allocation12], 1
    %s1031 = scalar_lea.sflag [#allocation12], 1
    %1032 = vsyncpa %s1031, 1

</llo_original>
